<compile_context>
chip_gen: v7x
topology: tpu7x:2x2x1
jax: 0.10.0
libtpu: 0.0.40
codegen_flags: <defaults>
</compile_context>

<pallas_src>
import functools

import jax
import jax.numpy as jnp
from jax.experimental import pallas as pl
from jax.experimental.pallas import tpu as pltpu

_EPS = 1e-8
_LANES = 128
_MAX_BLOCK_ROWS = 2048  # 2048 x 128 f32 = 1 MiB per input per grid step.


def _round_up(x, m):
    return ((x + m - 1) // m) * m


def _partials_kernel(p_ref, t_ref, dot_ref, pp_ref, tt_ref, *,
                     total_rows, mask_tail):
    p = p_ref[...].astype(jnp.float32)
    t = t_ref[...].astype(jnp.float32)

    if mask_tail:
        # The last chunk overhangs the array; zero the out-of-bounds rows so the
        # (undefined) overhang data contributes nothing to any of the 3 sums.
        block_rows = p_ref.shape[0]
        row0 = pl.program_id(0) * block_rows
        ridx = row0 + jax.lax.broadcasted_iota(jnp.int32, p.shape, 0)
        valid = ridx < total_rows
        zero = jnp.float32(0.0)
        p = jnp.where(valid, p, zero)
        t = jnp.where(valid, t, zero)

    br = p_ref.shape[0]

    def partial_sum(x):
        # (br, 128) -> (br//8, 8, 128) is tile-aligned (free relayout); reducing
        # the leading axis is plain VPU adds of (8, 128) tiles.
        return jnp.sum(x.reshape(br // 8, 8, _LANES), axis=0)

    dot_ref[...] = partial_sum(p * t)
    pp_ref[...] = partial_sum(p * p)
    tt_ref[...] = partial_sum(t * t)


def proj_cos(pred, target):
    """Equivalent of ProjCos.forward: cosine similarity of flattened tensors."""
    p = pred.reshape(-1)
    t = target.reshape(-1)
    assert p.shape == t.shape, "pred and target must have the same number of elements"
    n = p.shape[0]

    # Lane alignment: only pad when n is not a multiple of 128 (zero padding
    # does not change any of the three sums).
    # TODO(synk): the unaligned case still materializes a padded copy; a
    # scalar-prefetch + in-kernel lane mask would avoid that extra HBM pass.
    if n % _LANES != 0:
        pad = _LANES - n % _LANES
        p = jnp.pad(p, (0, pad))
        t = jnp.pad(t, (0, pad))
    rows = p.shape[0] // _LANES
    p2 = p.reshape(rows, _LANES)
    t2 = t.reshape(rows, _LANES)

    block_rows = min(_MAX_BLOCK_ROWS, _round_up(rows, 8))
    num_chunks = (rows + block_rows - 1) // block_rows
    mask_tail = (rows % block_rows) != 0

    kernel = functools.partial(
        _partials_kernel, total_rows=rows, mask_tail=mask_tail)

    out_sds = jax.ShapeDtypeStruct((num_chunks * 8, _LANES), jnp.float32)
    dots, pps, tts = pl.pallas_call(
        kernel,
        out_shape=(out_sds, out_sds, out_sds),
        grid_spec=pltpu.PrefetchScalarGridSpec(
            num_scalar_prefetch=0,
            grid=(num_chunks,),
            in_specs=[
                pl.BlockSpec((block_rows, _LANES), lambda i: (i, 0)),
                pl.BlockSpec((block_rows, _LANES), lambda i: (i, 0)),
            ],
            out_specs=(
                pl.BlockSpec((8, _LANES), lambda i: (i, 0)),
                pl.BlockSpec((8, _LANES), lambda i: (i, 0)),
                pl.BlockSpec((8, _LANES), lambda i: (i, 0)),
            ),
        ),
        compiler_params=pltpu.CompilerParams(
            dimension_semantics=("parallel",),  # independent chunks -> megacore OK
        ),
    )(p2, t2)

    dot = jnp.sum(dots)
    pp = jnp.sum(pps)
    tt = jnp.sum(tts)
    # PyTorch F.cosine_similarity semantics: dot / sqrt(clamp(pp*tt, eps^2)).
    denom = jnp.sqrt(jnp.maximum(pp * tt, jnp.float32(_EPS * _EPS)))
    cos = dot / denom
    return cos.astype(jnp.result_type(pred, target))


if __name__ == "__main__":
    key = jax.random.PRNGKey(0)
    k1, k2 = jax.random.split(key)
    # NCHW inputs, as a PyTorch conv-style feature map would be.
    pred = jax.random.normal(k1, (2, 4, 16, 16), dtype=jnp.float32)
    target = jax.random.normal(k2, (2, 4, 16, 16), dtype=jnp.float32)

    result = jax.block_until_ready(proj_cos(pred, target))

    # Reference check (plain JAX), mirrors F.cosine_similarity(dim=0, eps=1e-8).
    pf, tf = pred.reshape(-1), target.reshape(-1)
    ref = jnp.dot(pf, tf) / jnp.sqrt(
        jnp.maximum(jnp.dot(pf, pf) * jnp.dot(tf, tf), jnp.float32(_EPS * _EPS))
    )
    assert jnp.allclose(result, ref, atol=1e-5, rtol=1e-5)

    print("KERNEL_OK")
</pallas_src>

<mosaic_0001>
module attributes {stable_mosaic.version = 11 : i64} {
  func.func @_partials_kernel(%arg0: i32, %arg1: memref<16x128xf32, #tpu.memory_space<vmem>>, %arg2: memref<16x128xf32, #tpu.memory_space<vmem>>, %arg3: memref<8x128xf32, #tpu.memory_space<vmem>>, %arg4: memref<8x128xf32, #tpu.memory_space<vmem>>, %arg5: memref<8x128xf32, #tpu.memory_space<vmem>>) attributes {dimension_semantics = [#tpu.dimension_semantics<parallel>], iteration_bounds = array<i64: 1>, scalar_prefetch = 0 : i64, scratch_operands = 0 : i64, tpu.core_type = #tpu.core_type<tc>, window_params = [{transform_indices = @transform_0, window_bounds = array<i64: 16, 128>}, {transform_indices = @transform_1, window_bounds = array<i64: 16, 128>}, {transform_indices = @transform_2, window_bounds = array<i64: 8, 128>}, {transform_indices = @transform_3, window_bounds = array<i64: 8, 128>}, {transform_indices = @transform_4, window_bounds = array<i64: 8, 128>}]} {
    %c0 = arith.constant 0 : index
    %c0_0 = arith.constant 0 : index
    %0 = vector.load %arg1[%c0, %c0_0] : memref<16x128xf32, #tpu.memory_space<vmem>>, vector<16x128xf32>
    %c0_1 = arith.constant 0 : index
    %c0_2 = arith.constant 0 : index
    %1 = vector.load %arg2[%c0_1, %c0_2] : memref<16x128xf32, #tpu.memory_space<vmem>>, vector<16x128xf32>
    %2 = arith.mulf %0, %1 : vector<16x128xf32>
    %3 = vector.shape_cast %2 : vector<16x128xf32> to vector<2x8x128xf32>
    %cst = arith.constant dense<0.000000e+00> : vector<8x128xf32>
    %4 = vector.multi_reduction <add>, %3, %cst [0] : vector<2x8x128xf32> to vector<8x128xf32>
    %c0_3 = arith.constant 0 : index
    %c0_4 = arith.constant 0 : index
    %5 = vector.load %arg3[%c0_3, %c0_4] : memref<8x128xf32, #tpu.memory_space<vmem>>, vector<8x128xf32>
    tpu.vector_store %arg3[%c0_3, %c0_4], %4 {strides = array<i32>} : memref<8x128xf32, #tpu.memory_space<vmem>>, vector<8x128xf32>,
    %6 = arith.mulf %0, %0 : vector<16x128xf32>
    %7 = vector.shape_cast %6 : vector<16x128xf32> to vector<2x8x128xf32>
    %cst_5 = arith.constant dense<0.000000e+00> : vector<8x128xf32>
    %8 = vector.multi_reduction <add>, %7, %cst_5 [0] : vector<2x8x128xf32> to vector<8x128xf32>
    %c0_6 = arith.constant 0 : index
    %c0_7 = arith.constant 0 : index
    %9 = vector.load %arg4[%c0_6, %c0_7] : memref<8x128xf32, #tpu.memory_space<vmem>>, vector<8x128xf32>
    tpu.vector_store %arg4[%c0_6, %c0_7], %8 {strides = array<i32>} : memref<8x128xf32, #tpu.memory_space<vmem>>, vector<8x128xf32>,
    %10 = arith.mulf %1, %1 : vector<16x128xf32>
    %11 = vector.shape_cast %10 : vector<16x128xf32> to vector<2x8x128xf32>
    %cst_8 = arith.constant dense<0.000000e+00> : vector<8x128xf32>
    %12 = vector.multi_reduction <add>, %11, %cst_8 [0] : vector<2x8x128xf32> to vector<8x128xf32>
    %c0_9 = arith.constant 0 : index
    %c0_10 = arith.constant 0 : index
    %13 = vector.load %arg5[%c0_9, %c0_10] : memref<8x128xf32, #tpu.memory_space<vmem>>, vector<8x128xf32>
    tpu.vector_store %arg5[%c0_9, %c0_10], %12 {strides = array<i32>} : memref<8x128xf32, #tpu.memory_space<vmem>>, vector<8x128xf32>,
    return
  }
  func.func @transform_0(%arg0: i32) -> (i32, i32) {
    %c0_i32 = arith.constant 0 : i32
    %c0_i32_0 = arith.constant 0 : i32
    return %arg0, %c0_i32 : i32, i32
  }
  func.func @transform_1(%arg0: i32) -> (i32, i32) {
    %c0_i32 = arith.constant 0 : i32
    %c0_i32_0 = arith.constant 0 : i32
    return %arg0, %c0_i32 : i32, i32
  }
  func.func @transform_2(%arg0: i32) -> (i32, i32) {
    %c0_i32 = arith.constant 0 : i32
    %c0_i32_0 = arith.constant 0 : i32
    return %arg0, %c0_i32 : i32, i32
  }
  func.func @transform_3(%arg0: i32) -> (i32, i32) {
    %c0_i32 = arith.constant 0 : i32
    %c0_i32_0 = arith.constant 0 : i32
    return %arg0, %c0_i32 : i32, i32
  }
  func.func @transform_4(%arg0: i32) -> (i32, i32) {
    %c0_i32 = arith.constant 0 : i32
    %c0_i32_0 = arith.constant 0 : i32
    return %arg0, %c0_i32 : i32, i32
  }
}

</mosaic_0001>

<llo_original>
// kernel: tpu_custom_call.1
$region0: #{tpu_custom_call.1}
  #allocation0 [shape = 'u32[]', space=smem, size = 0x4, offset = 0x4, fixed_abs, tag = 'smem constant byte address 0x4 - core index']
  #allocation1 [shape = 'u32[144,128]{1,0:T(1,128)}', space=vmem, size = 0x12000, scoped, tag = 'internal scratch']
  %s0 = inlined_call_operand.hbm [shape: f32[16,128], index: 0, kind: input, shape index: {}]
  %s1 = inlined_call_operand.hbm [shape: f32[16,128], index: 1, kind: input, shape index: {}]
  %s2 = inlined_call_operand.hbm [shape: f32[8,128], index: 2, kind: output, shape index: {0}]
  %s3 = inlined_call_operand.hbm [shape: f32[8,128], index: 3, kind: output, shape index: {1}]
  %s4 = inlined_call_operand.hbm [shape: f32[8,128], index: 4, kind: output, shape index: {2}]
  %5 = xla_tuple %s2, %s3, %s4
  %s6 = sld [smem:[#allocation0]]
  $region42: #{tpu_custom_call.1} parent=0
    _
  %s8 = ssub.s32 1, %s6
  %s9 = scalar_select 0, %s8, %s6
  $region1: #{tpu_custom_call.1} parent=0
    #allocation2 [shape = 'u8[8192]{0}', space=vmem, size = 0x2000, scoped, tag = 'input window, operand 0, single buffered']
    #allocation3 [shape = 's32[1]{0}', space=sflag, size = 0x4, scoped, tag = 'scoped memory for tpu_custom_call.1']
    #allocation4 [shape = 's32[1]{0}', space=sflag, size = 0x4, scoped, tag = 'scoped memory for tpu_custom_call.1']
    #allocation5 [shape = 'u8[8192]{0}', space=vmem, size = 0x2000, scoped, tag = 'input window, operand 1, single buffered']
    #allocation6 [shape = 's32[1]{0}', space=sflag, size = 0x4, scoped, tag = 'scoped memory for tpu_custom_call.1']
    #allocation7 [shape = 'u8[4096]{0}', space=vmem, size = 0x1000, scoped, tag = 'output window, operand 0, single buffered']
    #allocation8 [shape = 'u8[4096]{0}', space=vmem, size = 0x1000, scoped, tag = 'output window, operand 1, single buffered']
    #allocation9 [shape = 's32[1]{0}', space=sflag, size = 0x4, scoped, tag = 'scoped memory for tpu_custom_call.1']
    #allocation10 [shape = 'u8[4096]{0}', space=vmem, size = 0x1000, scoped, tag = 'output window, operand 2, single buffered']
    %10 = vsyncpa [#allocation3], 0
    %11 = vsyncpa [#allocation6], 0
    %12 = vsyncpa [#allocation4], 0
    %13 = vsyncpa [#allocation9], 0
    // Predicated region
    $region2: #{tpu_custom_call.1} parent=1 // pred_check
      _
    $region3: #{tpu_custom_call.1} parent=1 // pred_check_branch
      %15 = sbr.rel (0) target = $region5
    $region4: #{tpu_custom_call.1} parent=1 // pred_region
      %s17 = ssub.s32 256, 256
      %18 = vsyncadd [#allocation3], %s17
      %s19 = sshll.u32 [#allocation2], 4
      %s20 = int_to_ptr.vmem [resolvable:$true] %s19
      %25 = dma.hbm_to_vmem [thread:$0]  %s0, 256, %s20, [#allocation3], 128, 128, 8
    $region5: #{tpu_custom_call.1} parent=1 // pred_fallthru
      _
    // Predicated region
    $region6: #{tpu_custom_call.1} parent=1 // pred_check
      _
    $region7: #{tpu_custom_call.1} parent=1 // pred_check_branch
      %27 = sbr.rel (0) target = $region9
    $region8: #{tpu_custom_call.1} parent=1 // pred_region
      %s29 = ssub.s32 256, 256
      %30 = vsyncadd [#allocation6], %s29
      %s31 = sshll.u32 [#allocation5], 4
      %s32 = int_to_ptr.vmem [resolvable:$true] %s31
      %37 = dma.hbm_to_vmem [thread:$0]  %s1, 256, %s32, [#allocation6], 128, 128, 8
    $region9: #{tpu_custom_call.1} parent=1 // pred_fallthru
      _
    // Predicated region
    $region10: #{tpu_custom_call.1} parent=1 // pred_check
      _
    $region11: #{tpu_custom_call.1} parent=1 // pred_check_branch
      %39 = sbr.rel (0) target = $region13
    $region12: #{tpu_custom_call.1} parent=1 // pred_region
      %40 = dma.done [#allocation3], 256
    $region13: #{tpu_custom_call.1} parent=1 // pred_fallthru
      _
    // Predicated region
    $region14: #{tpu_custom_call.1} parent=1 // pred_check
      _
    $region15: #{tpu_custom_call.1} parent=1 // pred_check_branch
      %42 = sbr.rel (0) target = $region17
    $region16: #{tpu_custom_call.1} parent=1 // pred_region
      %43 = dma.done [#allocation6], 256
    $region17: #{tpu_custom_call.1} parent=1 // pred_fallthru
      _
    %v44 = vld [vmem:[#allocation2] sm:$0xff]
    %v45 = vld [vmem:[#allocation2 + $0x8] sm:$0xff]
    %v46 = vld [vmem:[#allocation5] sm:$0xff]
    %v47 = vld [vmem:[#allocation5 + $0x8] sm:$0xff]
    %v48 = vmul.f32 %v44, %v46
    %v49 = vmul.f32 %v45, %v47
    %v50 = vadd.f32 %v48, %v49
    %51 = vst [vmem:[#allocation7] sm:$0xff] %v50
    %v52 = vmul.f32 %v44, %v44
    %v53 = vmul.f32 %v45, %v45
    %v54 = vadd.f32 %v52, %v53
    %55 = vst [vmem:[#allocation8] sm:$0xff] %v54
    %v56 = vmul.f32 %v46, %v46
    %v57 = vmul.f32 %v47, %v47
    %v58 = vadd.f32 %v56, %v57
    %59 = vst [vmem:[#allocation10] sm:$0xff] %v58
    // Predicated region
    $region18: #{tpu_custom_call.1} parent=1 // pred_check
      _
    $region19: #{tpu_custom_call.1} parent=1 // pred_check_branch
      %61 = sbr.rel (0) target = $region21
    $region20: #{tpu_custom_call.1} parent=1 // pred_region
      %s63 = ssub.s32 128, 128
      %64 = vsyncadd [#allocation4], %s63
      %s66 = sshll.u32 [#allocation7], 4
      %s67 = int_to_ptr.vmem [resolvable:$true] %s66
      %69 = dma.vmem_to_hbm [thread:$0]  %s67, 128, %s2, [#allocation4]
    $region21: #{tpu_custom_call.1} parent=1 // pred_fallthru
      _
    // Predicated region
    $region22: #{tpu_custom_call.1} parent=1 // pred_check
      _
    $region23: #{tpu_custom_call.1} parent=1 // pred_check_branch
      %71 = sbr.rel (0) target = $region25
    $region24: #{tpu_custom_call.1} parent=1 // pred_region
      %s73 = ssub.s32 128, 128
      %74 = vsyncadd [#allocation9], %s73
      %s76 = sshll.u32 [#allocation8], 4
      %s77 = int_to_ptr.vmem [resolvable:$true] %s76
      %79 = dma.vmem_to_hbm [thread:$0]  %s77, 128, %s3, [#allocation9]
    $region25: #{tpu_custom_call.1} parent=1 // pred_fallthru
      _
    // Predicated region
    $region26: #{tpu_custom_call.1} parent=1 // pred_check
      _
    $region27: #{tpu_custom_call.1} parent=1 // pred_check_branch
      %81 = sbr.rel (0) target = $region29
    $region28: #{tpu_custom_call.1} parent=1 // pred_region
      %s83 = ssub.s32 128, 128
      %84 = vsyncadd [#allocation9], %s83
      %s86 = sshll.u32 [#allocation10], 4
      %s87 = int_to_ptr.vmem [resolvable:$true] %s86
      %89 = dma.vmem_to_hbm [thread:$0]  %s87, 128, %s4, [#allocation9]
    $region29: #{tpu_custom_call.1} parent=1 // pred_fallthru
      _
    // Predicated region
    $region30: #{tpu_custom_call.1} parent=1 // pred_check
      _
    $region31: #{tpu_custom_call.1} parent=1 // pred_check_branch
      %91 = sbr.rel (0) target = $region33
    $region32: #{tpu_custom_call.1} parent=1 // pred_region
      %92 = dma.done [#allocation4], 128
    $region33: #{tpu_custom_call.1} parent=1 // pred_fallthru
      _
    // Predicated region
    $region34: #{tpu_custom_call.1} parent=1 // pred_check
      _
    $region35: #{tpu_custom_call.1} parent=1 // pred_check_branch
      %94 = sbr.rel (0) target = $region37
    $region36: #{tpu_custom_call.1} parent=1 // pred_region
      %95 = dma.done [#allocation9], 128
    $region37: #{tpu_custom_call.1} parent=1 // pred_fallthru
      _
    // Predicated region
    $region38: #{tpu_custom_call.1} parent=1 // pred_check
      _
    $region39: #{tpu_custom_call.1} parent=1 // pred_check_branch
      %97 = sbr.rel (0) target = $region41
    $region40: #{tpu_custom_call.1} parent=1 // pred_region
      %98 = dma.done [#allocation9], 128
    $region41: #{tpu_custom_call.1} parent=1 // pred_fallthru
      _
    %99 = vsyncpa [#allocation3], 1
    %100 = vsyncpa [#allocation6], 1
    %101 = vsyncpa [#allocation4], 1
    %102 = vsyncpa [#allocation9], 1

</llo_original>
